<compile_context>
chip_gen: v7x
topology: tpu7x:2x2x1
jax: 0.10.0
libtpu: 0.0.40
codegen_flags: <defaults>
</compile_context>

<pallas_src>
import functools

import jax
import jax.numpy as jnp
import numpy as np
from jax.experimental import pallas as pl
from jax.experimental.pallas import tpu as pltpu

LANE = 128


def _round_up(x, m):
    return (x + m - 1) // m * m


# ---------------------------------------------------------------------------
# Fused Pallas kernel: one batch row per grid step, all math inside.
# ---------------------------------------------------------------------------
def _cnn_fused_kernel(ids_ref, table_ref, wcat_ref, ball_ref, fcw_ref, fcb_ref,
                      prob_ref, feat_ref, *, S, V, F, kernel_sizes,
                      feat_pad, cls_pad):
    # ---- embedding lookup as an exact one-hot matmul (table in VMEM) ----
    ids = ids_ref[0]                                                  # (S, 1) int32
    onehot = (jax.lax.broadcasted_iota(jnp.int32, (S, V), 1) == ids)
    emb = jnp.dot(onehot.astype(jnp.float32), table_ref[...],
                  preferred_element_type=jnp.float32)                 # (S, D)

    # ---- all convolutions as ONE stacked matmul ----
    p = jnp.dot(emb, wcat_ref[...], preferred_element_type=jnp.float32)  # (S, C)

    # ---- per kernel size: bias + sum of row-shifted slices, ReLU, max-pool ----
    pooled = []
    base = 0
    for ki, k in enumerate(kernel_sizes):
        L = S - k + 1
        acc = jnp.zeros((L, F), jnp.float32) + ball_ref[:, ki * F:(ki + 1) * F]
        for j in range(k):
            acc = acc + p[j:j + L, base + j * F: base + (j + 1) * F]
        base += k * F
        pooled.append(jnp.max(jnp.maximum(acc, 0.0), axis=0, keepdims=True))  # (1, F)

    feat = jnp.concatenate(pooled, axis=1)                            # (1, nk*F)

    # ---- FC + softmax on a lane-dense (1, cls_pad) tile (pad lanes biased -1e30) ----
    logits = (jnp.dot(feat, fcw_ref[...], preferred_element_type=jnp.float32)
              + fcb_ref[...])
    m = jnp.max(logits, axis=1, keepdims=True)
    e = jnp.exp(logits - m)
    probs = e * pl.reciprocal(jnp.sum(e, axis=1, keepdims=True), approx=True)
    prob_ref[0] = probs

    nf = len(kernel_sizes) * F
    if feat_pad > nf:
        feat = jnp.concatenate(
            [feat, jnp.zeros((1, feat_pad - nf), jnp.float32)], axis=1)
    feat_ref[0] = feat


# ---------------------------------------------------------------------------
# Wrapper: weight packing (layout plumbing) + the single pallas_call
# ---------------------------------------------------------------------------
def cnn_forward(token_ids, params, kernel_sizes):
    B, S = token_ids.shape
    table = params["embedding"]                                       # (V, D)
    V, D = table.shape
    F = params[f"conv_w_{kernel_sizes[0]}"].shape[1]
    nk = len(kernel_sizes)
    NF = nk * F
    num_classes = params["fc_w"].shape[1]
    C = sum(kernel_sizes) * F
    feat_pad = _round_up(NF, LANE)
    cls_pad = _round_up(num_classes, LANE)

    # One stacked conv weight (D, C): column block (k, shift j) = conv_w_k[j*D:(j+1)*D, :]
    wcat = jnp.concatenate(
        [params[f"conv_w_{k}"][j * D:(j + 1) * D, :]
         for k in kernel_sizes for j in range(k)], axis=1)
    ball = jnp.concatenate([params[f"conv_b_{k}"] for k in kernel_sizes], axis=1)  # (1, NF)

    # FC rows permuted from PyTorch interleave (f*nk + j) to contiguous-per-k (j*F + f);
    # columns zero-padded to 128 lanes; pad-lane bias -1e30 so softmax ignores them.
    perm = np.arange(F * nk).reshape(F, nk).T.reshape(-1)             # perm[j*F+f] = f*nk+j
    fcw = params["fc_w"][perm, :]
    fcw = jnp.concatenate(
        [fcw, jnp.zeros((NF, cls_pad - num_classes), jnp.float32)], axis=1)
    fcb = jnp.concatenate(
        [params["fc_b"], jnp.full((1, cls_pad - num_classes), -1e30, jnp.float32)],
        axis=1)

    ids3 = token_ids.astype(jnp.int32)[:, :, None]                    # (B, S, 1)

    kern = functools.partial(
        _cnn_fused_kernel, S=S, V=V, F=F, kernel_sizes=tuple(kernel_sizes),
        feat_pad=feat_pad, cls_pad=cls_pad)

    probs_pad, feat_slab = pl.pallas_call(
        kern,
        grid=(B,),
        in_specs=[
            pl.BlockSpec((1, S, 1), lambda b: (b, 0, 0)),             # token ids (row b)
            pl.BlockSpec((V, D), lambda b: (0, 0)),                   # embedding table
            pl.BlockSpec((D, C), lambda b: (0, 0)),                   # stacked conv weight
            pl.BlockSpec((1, NF), lambda b: (0, 0)),                  # conv biases
            pl.BlockSpec((NF, cls_pad), lambda b: (0, 0)),            # fc weight (padded)
            pl.BlockSpec((1, cls_pad), lambda b: (0, 0)),             # fc bias (padded)
        ],
        out_specs=(
            pl.BlockSpec((1, 1, cls_pad), lambda b: (b, 0, 0)),       # probs slab
            pl.BlockSpec((1, 1, feat_pad), lambda b: (b, 0, 0)),      # feature slab
        ),
        out_shape=(
            jax.ShapeDtypeStruct((B, 1, cls_pad), jnp.float32),
            jax.ShapeDtypeStruct((B, 1, feat_pad), jnp.float32),
        ),
        compiler_params=pltpu.CompilerParams(
            dimension_semantics=("parallel",),
            vmem_limit_bytes=32 * 1024 * 1024,
        ),
    )(ids3, table, wcat, ball, fcw, fcb)

    probs = probs_pad[:, 0, :num_classes]
    # back to the PyTorch torch.cat(dim=2).view(B,-1) interleave (f*nk + j)
    inv = np.arange(nk * F).reshape(nk, F).T.reshape(-1)              # inv[f*nk+j] = j*F+f
    feat = feat_slab[:, 0, :NF][:, inv]
    return probs, feat


# ---------------------------------------------------------------------------
# Pure-JAX reference mirroring the PyTorch forward (correctness check)
# ---------------------------------------------------------------------------
def cnn_forward_reference(token_ids, params, kernel_sizes):
    emb = jnp.take(params["embedding"], token_ids, axis=0)            # (B, S, D)
    B, S, D = emb.shape
    pooled = []
    for k in kernel_sizes:
        L = S - k + 1
        xw = jnp.stack([emb[:, j:j + L, :] for j in range(k)], axis=2).reshape(B, L, k * D)
        s = jnp.einsum("blc,cf->blf", xw, params[f"conv_w_{k}"],
                       precision=jax.lax.Precision.HIGHEST) + params[f"conv_b_{k}"]
        pooled.append(jnp.max(jax.nn.relu(s), axis=1))                # (B, F)
    feat = jnp.stack(pooled, axis=2).reshape(B, -1)                   # f*nk + j layout
    logits = jnp.dot(feat, params["fc_w"],
                     precision=jax.lax.Precision.HIGHEST) + params["fc_b"]
    return jax.nn.softmax(logits, axis=1), feat


# ---------------------------------------------------------------------------
# Deterministic parameters + demo
# ---------------------------------------------------------------------------
def init_params(key, vocab_size, embedding_dim, num_filters, kernel_sizes, num_classes=2):
    keys = jax.random.split(key, 2 + 2 * len(kernel_sizes) + 2)
    params = {}
    params["embedding"] = jax.random.normal(
        keys[0], (vocab_size, embedding_dim), jnp.float32) * 0.1
    for i, k in enumerate(kernel_sizes):
        kd = k * embedding_dim
        params[f"conv_w_{k}"] = jax.random.normal(
            keys[1 + 2 * i], (kd, num_filters), jnp.float32) * (1.0 / jnp.sqrt(kd))
        params[f"conv_b_{k}"] = jax.random.normal(
            keys[2 + 2 * i], (1, num_filters), jnp.float32) * 0.01
    in_dim = num_filters * len(kernel_sizes)
    params["fc_w"] = jax.random.normal(
        keys[-2], (in_dim, num_classes), jnp.float32) * (1.0 / jnp.sqrt(in_dim))
    params["fc_b"] = jax.random.normal(keys[-1], (1, num_classes), jnp.float32) * 0.01
    return params


if __name__ == "__main__":
    B = 2               # batch
    S = 16              # sentence_len
    D = 32              # embedding_dim
    F = 16              # num_filters
    VOCAB = 50
    KERNEL_SIZES = [3, 4, 5]

    key = jax.random.PRNGKey(0)
    k_tok, k_par = jax.random.split(key)
    token_ids = jax.random.randint(k_tok, (B, S), 0, VOCAB, dtype=jnp.int32)
    params = init_params(k_par, VOCAB, D, F, KERNEL_SIZES)

    probs, feat = cnn_forward(token_ids, params, KERNEL_SIZES)
    probs = jax.block_until_ready(probs)
    feat = jax.block_until_ready(feat)

    # Correctness check vs pure-JAX reference.
    probs_ref, feat_ref = cnn_forward_reference(token_ids, params, KERNEL_SIZES)
    assert probs.shape == (B, 2) and feat.shape == (B, F * len(KERNEL_SIZES))
    assert jnp.allclose(feat, feat_ref, atol=1e-4, rtol=1e-4), \
        float(jnp.max(jnp.abs(feat - feat_ref)))
    # softmax denominator uses pl.reciprocal(approx=True) -> slightly looser tol
    assert jnp.allclose(probs, probs_ref, atol=5e-3, rtol=5e-3), \
        float(jnp.max(jnp.abs(probs - probs_ref)))

    print("KERNEL_OK")
</pallas_src>

<mosaic_0001>
module attributes {stable_mosaic.version = 11 : i64} {
  func.func @_cnn_fused_kernel(%arg0: i32, %arg1: memref<1x16x1xi32, #tpu.memory_space<vmem>>, %arg2: memref<50x32xf32, #tpu.memory_space<vmem>>, %arg3: memref<32x192xf32, #tpu.memory_space<vmem>>, %arg4: memref<1x48xf32, #tpu.memory_space<vmem>>, %arg5: memref<48x128xf32, #tpu.memory_space<vmem>>, %arg6: memref<1x128xf32, #tpu.memory_space<vmem>>, %arg7: memref<1x1x128xf32, #tpu.memory_space<vmem>>, %arg8: memref<1x1x128xf32, #tpu.memory_space<vmem>>) attributes {dimension_semantics = [#tpu.dimension_semantics<parallel>], iteration_bounds = array<i64: 2>, scalar_prefetch = 0 : i64, scratch_operands = 0 : i64, tpu.core_type = #tpu.core_type<tc>, window_params = [{transform_indices = @transform_0, window_bounds = array<i64: 1, 16, 1>}, {pipeline_mode = #tpu.pipeline_mode<synchronous>, transform_indices = @transform_1, window_bounds = array<i64: 50, 32>}, {pipeline_mode = #tpu.pipeline_mode<synchronous>, transform_indices = @transform_2, window_bounds = array<i64: 32, 192>}, {pipeline_mode = #tpu.pipeline_mode<synchronous>, transform_indices = @transform_3, window_bounds = array<i64: 1, 48>}, {pipeline_mode = #tpu.pipeline_mode<synchronous>, transform_indices = @transform_4, window_bounds = array<i64: 48, 128>}, {pipeline_mode = #tpu.pipeline_mode<synchronous>, transform_indices = @transform_5, window_bounds = array<i64: 1, 128>}, {transform_indices = @transform_6, window_bounds = array<i64: 1, 1, 128>}, {transform_indices = @transform_7, window_bounds = array<i64: 1, 1, 128>}]} {
    %c0 = arith.constant 0 : index
    %c0_0 = arith.constant 0 : index
    %c0_1 = arith.constant 0 : index
    %0 = vector.load %arg1[%c0, %c0_0, %c0_1] : memref<1x16x1xi32, #tpu.memory_space<vmem>>, vector<1x16x1xi32>
    %1 = vector.shape_cast %0 : vector<1x16x1xi32> to vector<16x1xi32>
    %2 = tpu.iota {dimensions = array<i32: 1>} : vector<16x50xi32>
    %3 = vector.broadcast %1 : vector<16x1xi32> to vector<16x50xi32>
    %4 = arith.cmpi eq, %2, %3 : vector<16x50xi32>
    %5 = arith.extui %4 : vector<16x50xi1> to vector<16x50xi32>
    %6 = arith.sitofp %5 : vector<16x50xi32> to vector<16x50xf32>
    %c0_2 = arith.constant 0 : index
    %c0_3 = arith.constant 0 : index
    %7 = vector.load %arg2[%c0_2, %c0_3] : memref<50x32xf32, #tpu.memory_space<vmem>>, vector<50x32xf32>
    %cst = arith.constant dense<0.000000e+00> : vector<16x32xf32>
    %8 = tpu.matmul %6, %7, %cst {dimension_numbers = #tpu.dot_dimension_numbers<[1], [0], [0], [1], [0, 0, 1, 1], [], []>} : vector<16x50xf32>, vector<50x32xf32>, vector<16x32xf32> -> vector<16x32xf32>
    %c0_4 = arith.constant 0 : index
    %c0_5 = arith.constant 0 : index
    %9 = vector.load %arg3[%c0_4, %c0_5] : memref<32x192xf32, #tpu.memory_space<vmem>>, vector<32x192xf32>
    %cst_6 = arith.constant dense<0.000000e+00> : vector<16x192xf32>
    %10 = tpu.matmul %8, %9, %cst_6 {dimension_numbers = #tpu.dot_dimension_numbers<[1], [0], [0], [1], [0, 0, 1, 1], [], []>} : vector<16x32xf32>, vector<32x192xf32>, vector<16x192xf32> -> vector<16x192xf32>
    %cst_7 = arith.constant 0.000000e+00 : f32
    %11 = vector.broadcast %cst_7 : f32 to vector<14x16xf32>
    %c0_8 = arith.constant 0 : index
    %c0_9 = arith.constant 0 : index
    %12 = vector.load %arg4[%c0_8, %c0_9] : memref<1x48xf32, #tpu.memory_space<vmem>>, vector<1x16xf32>
    %13 = vector.broadcast %12 : vector<1x16xf32> to vector<14x16xf32>
    %14 = arith.addf %11, %13 : vector<14x16xf32>
    %15 = vector.extract_strided_slice %10 {offsets = [0, 0], sizes = [14, 16], strides = [1, 1]} : vector<16x192xf32> to vector<14x16xf32>
    %16 = arith.addf %14, %15 : vector<14x16xf32>
    %17 = vector.extract_strided_slice %10 {offsets = [1, 16], sizes = [14, 16], strides = [1, 1]} : vector<16x192xf32> to vector<14x16xf32>
    %18 = arith.addf %16, %17 : vector<14x16xf32>
    %19 = vector.extract_strided_slice %10 {offsets = [2, 32], sizes = [14, 16], strides = [1, 1]} : vector<16x192xf32> to vector<14x16xf32>
    %20 = arith.addf %18, %19 : vector<14x16xf32>
    %cst_10 = arith.constant 0.000000e+00 : f32
    %21 = vector.broadcast %cst_10 : f32 to vector<14x16xf32>
    %22 = arith.maximumf %20, %21 : vector<14x16xf32>
    %cst_11 = arith.constant dense<0xFF800000> : vector<16xf32>
    %23 = vector.multi_reduction <maximumf>, %22, %cst_11 [0] : vector<14x16xf32> to vector<16xf32>
    %24 = vector.shape_cast %23 : vector<16xf32> to vector<1x16xf32>
    %cst_12 = arith.constant 0.000000e+00 : f32
    %25 = vector.broadcast %cst_12 : f32 to vector<13x16xf32>
    %c0_13 = arith.constant 0 : index
    %c16 = arith.constant 16 : index
    %26 = vector.load %arg4[%c0_13, %c16] : memref<1x48xf32, #tpu.memory_space<vmem>>, vector<1x16xf32>
    %27 = vector.broadcast %26 : vector<1x16xf32> to vector<13x16xf32>
    %28 = arith.addf %25, %27 : vector<13x16xf32>
    %29 = vector.extract_strided_slice %10 {offsets = [0, 48], sizes = [13, 16], strides = [1, 1]} : vector<16x192xf32> to vector<13x16xf32>
    %30 = arith.addf %28, %29 : vector<13x16xf32>
    %31 = vector.extract_strided_slice %10 {offsets = [1, 64], sizes = [13, 16], strides = [1, 1]} : vector<16x192xf32> to vector<13x16xf32>
    %32 = arith.addf %30, %31 : vector<13x16xf32>
    %33 = vector.extract_strided_slice %10 {offsets = [2, 80], sizes = [13, 16], strides = [1, 1]} : vector<16x192xf32> to vector<13x16xf32>
    %34 = arith.addf %32, %33 : vector<13x16xf32>
    %35 = vector.extract_strided_slice %10 {offsets = [3, 96], sizes = [13, 16], strides = [1, 1]} : vector<16x192xf32> to vector<13x16xf32>
    %36 = arith.addf %34, %35 : vector<13x16xf32>
    %cst_14 = arith.constant 0.000000e+00 : f32
    %37 = vector.broadcast %cst_14 : f32 to vector<13x16xf32>
    %38 = arith.maximumf %36, %37 : vector<13x16xf32>
    %cst_15 = arith.constant dense<0xFF800000> : vector<16xf32>
    %39 = vector.multi_reduction <maximumf>, %38, %cst_15 [0] : vector<13x16xf32> to vector<16xf32>
    %40 = vector.shape_cast %39 : vector<16xf32> to vector<1x16xf32>
    %cst_16 = arith.constant 0.000000e+00 : f32
    %41 = vector.broadcast %cst_16 : f32 to vector<12x16xf32>
    %c0_17 = arith.constant 0 : index
    %c32 = arith.constant 32 : index
    %42 = vector.load %arg4[%c0_17, %c32] : memref<1x48xf32, #tpu.memory_space<vmem>>, vector<1x16xf32>
    %43 = vector.broadcast %42 : vector<1x16xf32> to vector<12x16xf32>
    %44 = arith.addf %41, %43 : vector<12x16xf32>
    %45 = vector.extract_strided_slice %10 {offsets = [0, 112], sizes = [12, 16], strides = [1, 1]} : vector<16x192xf32> to vector<12x16xf32>
    %46 = arith.addf %44, %45 : vector<12x16xf32>
    %47 = vector.extract_strided_slice %10 {offsets = [1, 128], sizes = [12, 16], strides = [1, 1]} : vector<16x192xf32> to vector<12x16xf32>
    %48 = arith.addf %46, %47 : vector<12x16xf32>
    %49 = vector.extract_strided_slice %10 {offsets = [2, 144], sizes = [12, 16], strides = [1, 1]} : vector<16x192xf32> to vector<12x16xf32>
    %50 = arith.addf %48, %49 : vector<12x16xf32>
    %51 = vector.extract_strided_slice %10 {offsets = [3, 160], sizes = [12, 16], strides = [1, 1]} : vector<16x192xf32> to vector<12x16xf32>
    %52 = arith.addf %50, %51 : vector<12x16xf32>
    %53 = vector.extract_strided_slice %10 {offsets = [4, 176], sizes = [12, 16], strides = [1, 1]} : vector<16x192xf32> to vector<12x16xf32>
    %54 = arith.addf %52, %53 : vector<12x16xf32>
    %cst_18 = arith.constant 0.000000e+00 : f32
    %55 = vector.broadcast %cst_18 : f32 to vector<12x16xf32>
    %56 = arith.maximumf %54, %55 : vector<12x16xf32>
    %cst_19 = arith.constant dense<0xFF800000> : vector<16xf32>
    %57 = vector.multi_reduction <maximumf>, %56, %cst_19 [0] : vector<12x16xf32> to vector<16xf32>
    %58 = vector.shape_cast %57 : vector<16xf32> to vector<1x16xf32>
    %59 = tpu.concatenate %24, %40, %58 in 1 : vector<1x16xf32>, vector<1x16xf32>, vector<1x16xf32> -> vector<1x48xf32>
    %c0_20 = arith.constant 0 : index
    %c0_21 = arith.constant 0 : index
    %60 = vector.load %arg5[%c0_20, %c0_21] : memref<48x128xf32, #tpu.memory_space<vmem>>, vector<48x128xf32>
    %cst_22 = arith.constant dense<0.000000e+00> : vector<1x128xf32>
    %61 = tpu.matmul %59, %60, %cst_22 {dimension_numbers = #tpu.dot_dimension_numbers<[1], [0], [0], [1], [0, 0, 1, 1], [], []>} : vector<1x48xf32>, vector<48x128xf32>, vector<1x128xf32> -> vector<1x128xf32>
    %c0_23 = arith.constant 0 : index
    %c0_24 = arith.constant 0 : index
    %62 = vector.load %arg6[%c0_23, %c0_24] : memref<1x128xf32, #tpu.memory_space<vmem>>, vector<1x128xf32>
    %63 = arith.addf %61, %62 : vector<1x128xf32>
    %cst_25 = arith.constant dense<0xFF800000> : vector<1xf32>
    %64 = vector.multi_reduction <maximumf>, %63, %cst_25 [1] : vector<1x128xf32> to vector<1xf32>
    %65 = vector.shape_cast %64 : vector<1xf32> to vector<1x1xf32>
    %66 = vector.broadcast %65 : vector<1x1xf32> to vector<1x128xf32>
    %67 = arith.subf %63, %66 : vector<1x128xf32>
    %68 = math.exp %67 : vector<1x128xf32>
    %cst_26 = arith.constant dense<0.000000e+00> : vector<1xf32>
    %69 = vector.multi_reduction <add>, %68, %cst_26 [1] : vector<1x128xf32> to vector<1xf32>
    %70 = vector.shape_cast %69 : vector<1xf32> to vector<1x1xf32>
    %71 = tpu.reciprocal %70 {approx = true} : vector<1x1xf32> -> vector<1x1xf32>
    %72 = vector.broadcast %71 : vector<1x1xf32> to vector<1x128xf32>
    %73 = arith.mulf %68, %72 : vector<1x128xf32>
    %c0_27 = arith.constant 0 : index
    %c0_28 = arith.constant 0 : index
    %c0_29 = arith.constant 0 : index
    %74 = vector.load %arg7[%c0_27, %c0_28, %c0_29] : memref<1x1x128xf32, #tpu.memory_space<vmem>>, vector<1x1x128xf32>
    %75 = vector.shape_cast %74 : vector<1x1x128xf32> to vector<1x128xf32>
    %76 = vector.shape_cast %73 : vector<1x128xf32> to vector<1x1x128xf32>
    tpu.vector_store %arg7[%c0_27, %c0_28, %c0_29], %76 {strides = array<i32>} : memref<1x1x128xf32, #tpu.memory_space<vmem>>, vector<1x1x128xf32>,
    %cst_30 = arith.constant 0.000000e+00 : f32
    %77 = vector.broadcast %cst_30 : f32 to vector<1x80xf32>
    %78 = tpu.concatenate %59, %77 in 1 : vector<1x48xf32>, vector<1x80xf32> -> vector<1x128xf32>
    %c0_31 = arith.constant 0 : index
    %c0_32 = arith.constant 0 : index
    %c0_33 = arith.constant 0 : index
    %79 = vector.load %arg8[%c0_31, %c0_32, %c0_33] : memref<1x1x128xf32, #tpu.memory_space<vmem>>, vector<1x1x128xf32>
    %80 = vector.shape_cast %79 : vector<1x1x128xf32> to vector<1x128xf32>
    %81 = vector.shape_cast %78 : vector<1x128xf32> to vector<1x1x128xf32>
    tpu.vector_store %arg8[%c0_31, %c0_32, %c0_33], %81 {strides = array<i32>} : memref<1x1x128xf32, #tpu.memory_space<vmem>>, vector<1x1x128xf32>,
    return
  }
  func.func @transform_0(%arg0: i32) -> (i32, i32, i32) {
    %c0_i32 = arith.constant 0 : i32
    %c0_i32_0 = arith.constant 0 : i32
    %c0_i32_1 = arith.constant 0 : i32
    return %arg0, %c0_i32, %c0_i32_0 : i32, i32, i32
  }
  func.func @transform_1(%arg0: i32) -> (i32, i32) {
    %c0_i32 = arith.constant 0 : i32
    %c0_i32_0 = arith.constant 0 : i32
    %c0_i32_1 = arith.constant 0 : i32
    return %c0_i32, %c0_i32_0 : i32, i32
  }
  func.func @transform_2(%arg0: i32) -> (i32, i32) {
    %c0_i32 = arith.constant 0 : i32
    %c0_i32_0 = arith.constant 0 : i32
    %c0_i32_1 = arith.constant 0 : i32
    return %c0_i32, %c0_i32_0 : i32, i32
  }
  func.func @transform_3(%arg0: i32) -> (i32, i32) {
    %c0_i32 = arith.constant 0 : i32
    %c0_i32_0 = arith.constant 0 : i32
    %c0_i32_1 = arith.constant 0 : i32
    return %c0_i32, %c0_i32_0 : i32, i32
  }
  func.func @transform_4(%arg0: i32) -> (i32, i32) {
    %c0_i32 = arith.constant 0 : i32
    %c0_i32_0 = arith.constant 0 : i32
    %c0_i32_1 = arith.constant 0 : i32
    return %c0_i32, %c0_i32_0 : i32, i32
  }
  func.func @transform_5(%arg0: i32) -> (i32, i32) {
    %c0_i32 = arith.constant 0 : i32
    %c0_i32_0 = arith.constant 0 : i32
    %c0_i32_1 = arith.constant 0 : i32
    return %c0_i32, %c0_i32_0 : i32, i32
  }
  func.func @transform_6(%arg0: i32) -> (i32, i32, i32) {
    %c0_i32 = arith.constant 0 : i32
    %c0_i32_0 = arith.constant 0 : i32
    %c0_i32_1 = arith.constant 0 : i32
    return %arg0, %c0_i32, %c0_i32_0 : i32, i32, i32
  }
  func.func @transform_7(%arg0: i32) -> (i32, i32, i32) {
    %c0_i32 = arith.constant 0 : i32
    %c0_i32_0 = arith.constant 0 : i32
    %c0_i32_1 = arith.constant 0 : i32
    return %arg0, %c0_i32, %c0_i32_0 : i32, i32, i32
  }
}

</mosaic_0001>

<llo_original>
// kernel: tpu_custom_call.1
$region0: #{tpu_custom_call.1}
  #allocation0 [shape = 'u32[]', space=smem, size = 0x4, offset = 0x4, fixed_abs, tag = 'smem constant byte address 0x4 - core index']
  #allocation1 [shape = 'u32[144,128]{1,0:T(1,128)}', space=vmem, size = 0x12000, scoped, tag = 'internal scratch']
  %s0 = inlined_call_operand.vmem [shape: s32[2,16,1], index: 0, kind: input, shape index: {}]
  %s1 = inlined_call_operand.vmem [shape: f32[50,32], index: 1, kind: input, shape index: {}]
  %s2 = inlined_call_operand.vmem [shape: f32[32,192], index: 2, kind: input, shape index: {}]
  %s3 = inlined_call_operand.vmem [shape: f32[1,48], index: 3, kind: input, shape index: {}]
  %s4 = inlined_call_operand.vmem [shape: f32[48,128], index: 4, kind: input, shape index: {}]
  %s5 = inlined_call_operand.vmem [shape: f32[1,128], index: 5, kind: input, shape index: {}]
  %s6 = inlined_call_operand.hbm [shape: f32[2,1,128], index: 6, kind: output, shape index: {0}]
  %s7 = inlined_call_operand.hbm [shape: f32[2,1,128], index: 7, kind: output, shape index: {1}]
  %8 = xla_tuple %s6, %s7
  %s9 = sld [smem:[#allocation0]]
  $region65: #{tpu_custom_call.1} parent=0
    _
  %s11 = ssub.s32 1, %s9
  %s12 = scalar_select 0, %s11, %s9
  $region1: #{tpu_custom_call.1} parent=0
    #allocation2 [shape = 'u8[1024]{0}', space=vmem, size = 0x400, scoped, tag = 'output window, operand 0']
    #allocation3 [shape = 's32[2]{0}', space=sflag, size = 0x8, scoped, tag = 'scoped memory for tpu_custom_call.1']
    #allocation4 [shape = 'u8[1024]{0}', space=vmem, size = 0x400, scoped, tag = 'output window, operand 1']
    #allocation5 [shape = 's32[2]{0}', space=sflag, size = 0x8, scoped, tag = 'scoped memory for tpu_custom_call.1']
    %13 = vsyncpa [#allocation3], 0
    %s14 = scalar_lea.sflag [#allocation3], 1
    %15 = vsyncpa %s14, 0
    %16 = vsyncpa [#allocation5], 0
    %s17 = scalar_lea.sflag [#allocation5], 1
    %18 = vsyncpa %s17, 0
    loop: start=0, step=1, limit=4
    $region2: #{tpu_custom_call.1} parent=1 // loop_pre_header
      _
    $region3: #{tpu_custom_call.1} parent=1 // loop_header
      %s20 = sphi 0, %s24
      %p21 = scmp.ge.s32.totalorder %s20, 4
      %s30 = sphi 0, %s32
      %s33 = sphi 0, %s30
      %s34 = sphi 0, %s33
      %s50 = sphi 0, %s34
      %s54 = sphi 0, %s54
      %s56 = sphi 0, %s54
      %s57 = sphi 0, %s56
      %s71 = sphi 0, %s57
      %s75 = sphi 0, %s75
      %s77 = sphi 0, %s75
      %s78 = sphi 0, %s77
      %s92 = sphi 0, %s78
      %s96 = sphi 0, %s96
      %s98 = sphi 0, %s96
      %s99 = sphi 0, %s98
      %s113 = sphi 0, %s99
      %s117 = sphi 0, %s117
      %s119 = sphi 0, %s117
      %s120 = sphi 0, %s119
      %s134 = sphi 0, %s120
      %s138 = sphi 0, %s138
      %s140 = sphi 0, %s138
      %s141 = sphi 0, %s140
      %s155 = sphi 0, %s141
      %s161 = sphi 0, %s163
      %s164 = sphi 0, %s161
      %s165 = sphi 0, %s164
      %s181 = sphi 0, %s165
      %s187 = sphi 0, %s189
      %s190 = sphi 0, %s187
      %s191 = sphi 0, %s190
      %s207 = sphi 0, %s191
    $region4: #{tpu_custom_call.1} parent=1 // loop_header_branch
      %23 = sbr.rel (%p21) target = $region8
    $region5: #{tpu_custom_call.1} parent=1 // loop_body
      %s25 = ssub.s32 %s20, 1
      %s26 = ssub.s32 %s20, 2
      %s27 = sadd.s32 %s20, 1
      %s28 = ssub.s32 %s20, %s27
      %p29 = scmp.eq.s32.totalorder %s28, 0
      %s31 = sadd.s32 %s30, 1
      %s32 = scalar_select %p29, %s30, %s31
      %p35 = pneg %p29
      %p36 = scmp.eq.s32.totalorder %s20, 1
      %p37 = por %p35, %p36
      %p38 = scmp.ne.s32.totalorder %s30, %s33
      %p39 = scmp.eq.s32.totalorder %s20, 0
      %p40 = por %p38, %p39
      %p41 = scmp.ne.s32.totalorder %s30, %s33
      %p42 = scmp.eq.s32.totalorder %s25, 1
      %p43 = por %p41, %p42
      %p44 = scmp.ne.s32.totalorder %s33, %s34
      %p45 = scmp.eq.s32.totalorder %s25, 0
      %p46 = por %p44, %p45
      %p47 = scmp.ne.s32.totalorder %s33, %s34
      %p48 = scmp.eq.s32.totalorder %s26, 1
      %p49 = por %p47, %p48
      %p51 = scmp.ne.s32.totalorder %s34, %s50
      %p52 = scmp.eq.s32.totalorder %s26, 0
      %p53 = por %p51, %p52
      %s55 = sadd.s32 %s54, 1
      %p58 = scmp.eq.s32.totalorder %s20, 1
      %p59 = scmp.ne.s32.totalorder %s54, %s56
      %p60 = scmp.eq.s32.totalorder %s20, 0
      %p61 = por %p59, %p60
      %p62 = scmp.ne.s32.totalorder %s54, %s56
      %p63 = scmp.eq.s32.totalorder %s25, 1
      %p64 = por %p62, %p63
      %p65 = scmp.ne.s32.totalorder %s56, %s57
      %p66 = scmp.eq.s32.totalorder %s25, 0
      %p67 = por %p65, %p66
      %p68 = scmp.ne.s32.totalorder %s56, %s57
      %p69 = scmp.eq.s32.totalorder %s26, 1
      %p70 = por %p68, %p69
      %p72 = scmp.ne.s32.totalorder %s57, %s71
      %p73 = scmp.eq.s32.totalorder %s26, 0
      %p74 = por %p72, %p73
      %s76 = sadd.s32 %s75, 1
      %p79 = scmp.eq.s32.totalorder %s20, 1
      %p80 = scmp.ne.s32.totalorder %s75, %s77
      %p81 = scmp.eq.s32.totalorder %s20, 0
      %p82 = por %p80, %p81
      %p83 = scmp.ne.s32.totalorder %s75, %s77
      %p84 = scmp.eq.s32.totalorder %s25, 1
      %p85 = por %p83, %p84
      %p86 = scmp.ne.s32.totalorder %s77, %s78
      %p87 = scmp.eq.s32.totalorder %s25, 0
      %p88 = por %p86, %p87
      %p89 = scmp.ne.s32.totalorder %s77, %s78
      %p90 = scmp.eq.s32.totalorder %s26, 1
      %p91 = por %p89, %p90
      %p93 = scmp.ne.s32.totalorder %s78, %s92
      %p94 = scmp.eq.s32.totalorder %s26, 0
      %p95 = por %p93, %p94
      %s97 = sadd.s32 %s96, 1
      %p100 = scmp.eq.s32.totalorder %s20, 1
      %p101 = scmp.ne.s32.totalorder %s96, %s98
      %p102 = scmp.eq.s32.totalorder %s20, 0
      %p103 = por %p101, %p102
      %p104 = scmp.ne.s32.totalorder %s96, %s98
      %p105 = scmp.eq.s32.totalorder %s25, 1
      %p106 = por %p104, %p105
      %p107 = scmp.ne.s32.totalorder %s98, %s99
      %p108 = scmp.eq.s32.totalorder %s25, 0
      %p109 = por %p107, %p108
      %p110 = scmp.ne.s32.totalorder %s98, %s99
      %p111 = scmp.eq.s32.totalorder %s26, 1
      %p112 = por %p110, %p111
      %p114 = scmp.ne.s32.totalorder %s99, %s113
      %p115 = scmp.eq.s32.totalorder %s26, 0
      %p116 = por %p114, %p115
      %s118 = sadd.s32 %s117, 1
      %p121 = scmp.eq.s32.totalorder %s20, 1
      %p122 = scmp.ne.s32.totalorder %s117, %s119
      %p123 = scmp.eq.s32.totalorder %s20, 0
      %p124 = por %p122, %p123
      %p125 = scmp.ne.s32.totalorder %s117, %s119
      %p126 = scmp.eq.s32.totalorder %s25, 1
      %p127 = por %p125, %p126
      %p128 = scmp.ne.s32.totalorder %s119, %s120
      %p129 = scmp.eq.s32.totalorder %s25, 0
      %p130 = por %p128, %p129
      %p131 = scmp.ne.s32.totalorder %s119, %s120
      %p132 = scmp.eq.s32.totalorder %s26, 1
      %p133 = por %p131, %p132
      %p135 = scmp.ne.s32.totalorder %s120, %s134
      %p136 = scmp.eq.s32.totalorder %s26, 0
      %p137 = por %p135, %p136
      %s139 = sadd.s32 %s138, 1
      %p142 = scmp.eq.s32.totalorder %s20, 1
      %p143 = scmp.ne.s32.totalorder %s138, %s140
      %p144 = scmp.eq.s32.totalorder %s20, 0
      %p145 = por %p143, %p144
      %p146 = scmp.ne.s32.totalorder %s138, %s140
      %p147 = scmp.eq.s32.totalorder %s25, 1
      %p148 = por %p146, %p147
      %p149 = scmp.ne.s32.totalorder %s140, %s141
      %p150 = scmp.eq.s32.totalorder %s25, 0
      %p151 = por %p149, %p150
      %p152 = scmp.ne.s32.totalorder %s140, %s141
      %p153 = scmp.eq.s32.totalorder %s26, 1
      %p154 = por %p152, %p153
      %p156 = scmp.ne.s32.totalorder %s141, %s155
      %p157 = scmp.eq.s32.totalorder %s26, 0
      %p158 = por %p156, %p157
      %s159 = ssub.s32 %s20, %s27
      %p160 = scmp.eq.s32.totalorder %s159, 0
      %s162 = sadd.s32 %s161, 1
      %s163 = scalar_select %p160, %s161, %s162
      %p166 = pneg %p160
      %p167 = scmp.eq.s32.totalorder %s20, 1
      %p168 = por %p166, %p167
      %p169 = scmp.ne.s32.totalorder %s161, %s164
      %p170 = scmp.eq.s32.totalorder %s20, 0
      %p171 = por %p169, %p170
      %p172 = scmp.ne.s32.totalorder %s161, %s164
      %p173 = scmp.eq.s32.totalorder %s25, 1
      %p174 = por %p172, %p173
      %p175 = scmp.ne.s32.totalorder %s164, %s165
      %p176 = scmp.eq.s32.totalorder %s25, 0
      %p177 = por %p175, %p176
      %p178 = scmp.ne.s32.totalorder %s164, %s165
      %p179 = scmp.eq.s32.totalorder %s26, 1
      %p180 = por %p178, %p179
      %p182 = scmp.ne.s32.totalorder %s165, %s181
      %p183 = scmp.eq.s32.totalorder %s26, 0
      %p184 = por %p182, %p183
      %s185 = ssub.s32 %s20, %s27
      %p186 = scmp.eq.s32.totalorder %s185, 0
      %s188 = sadd.s32 %s187, 1
      %s189 = scalar_select %p186, %s187, %s188
      %p192 = pneg %p186
      %p193 = scmp.eq.s32.totalorder %s20, 1
      %p194 = por %p192, %p193
      %p195 = scmp.ne.s32.totalorder %s187, %s190
      %p196 = scmp.eq.s32.totalorder %s20, 0
      %p197 = por %p195, %p196
      %p198 = scmp.ne.s32.totalorder %s187, %s190
      %p199 = scmp.eq.s32.totalorder %s25, 1
      %p200 = por %p198, %p199
      %p201 = scmp.ne.s32.totalorder %s190, %s191
      %p202 = scmp.eq.s32.totalorder %s25, 0
      %p203 = por %p201, %p202
      %p204 = scmp.ne.s32.totalorder %s190, %s191
      %p205 = scmp.eq.s32.totalorder %s26, 1
      %p206 = por %p204, %p205
      %p208 = scmp.ne.s32.totalorder %s191, %s207
      %p209 = scmp.eq.s32.totalorder %s26, 0
      %p210 = por %p208, %p209
      %p211 = scmp.le.s32.totalorder 1, %s20
      %p212 = scmp.lt.s32.totalorder %s20, 3
      %p213 = pnand %p211, %p212
      %p214 = pneg %p213
      // Predicated region
      $region9: #{tpu_custom_call.1} parent=5 // pred_check
        _
      $region10: #{tpu_custom_call.1} parent=5 // pred_check_branch
        %216 = sbr.rel (%p213) target = $region12
      $region11: #{tpu_custom_call.1} parent=5 // pred_region
        %s217 = ssub.s32 %s20, 1
        // Predicated region
        $region13: #{tpu_custom_call.1} parent=11 // pred_check
          %p218 = pneg %p67
        $region14: #{tpu_custom_call.1} parent=11 // pred_check_branch
          %220 = sbr.rel (%p218) target = $region16
        $region15: #{tpu_custom_call.1} parent=11 // pred_region
          _
        $region16: #{tpu_custom_call.1} parent=11 // pred_fallthru
          _
        // Predicated region
        $region17: #{tpu_custom_call.1} parent=11 // pred_check
          %p221 = pneg %p88
        $region18: #{tpu_custom_call.1} parent=11 // pred_check_branch
          %223 = sbr.rel (%p221) target = $region20
        $region19: #{tpu_custom_call.1} parent=11 // pred_region
          _
        $region20: #{tpu_custom_call.1} parent=11 // pred_fallthru
          _
        // Predicated region
        $region21: #{tpu_custom_call.1} parent=11 // pred_check
          %p224 = pneg %p109
        $region22: #{tpu_custom_call.1} parent=11 // pred_check_branch
          %226 = sbr.rel (%p224) target = $region24
        $region23: #{tpu_custom_call.1} parent=11 // pred_region
          _
        $region24: #{tpu_custom_call.1} parent=11 // pred_fallthru
          _
        // Predicated region
        $region25: #{tpu_custom_call.1} parent=11 // pred_check
          %p227 = pneg %p130
        $region26: #{tpu_custom_call.1} parent=11 // pred_check_branch
          %229 = sbr.rel (%p227) target = $region28
        $region27: #{tpu_custom_call.1} parent=11 // pred_region
          _
        $region28: #{tpu_custom_call.1} parent=11 // pred_fallthru
          _
        // Predicated region
        $region29: #{tpu_custom_call.1} parent=11 // pred_check
          %p230 = pneg %p151
        $region30: #{tpu_custom_call.1} parent=11 // pred_check_branch
          %232 = sbr.rel (%p230) target = $region32
        $region31: #{tpu_custom_call.1} parent=11 // pred_region
          _
        $region32: #{tpu_custom_call.1} parent=11 // pred_fallthru
          _
      $region12: #{tpu_custom_call.1} parent=5 // pred_fallthru
        _
      %p233 = scmp.lt.s32.totalorder %s20, 2
      // Predicated region
      $region33: #{tpu_custom_call.1} parent=5 // pred_check
        %p234 = pneg %p233
      $region34: #{tpu_custom_call.1} parent=5 // pred_check_branch
        %236 = sbr.rel (%p234) target = $region36
      $region35: #{tpu_custom_call.1} parent=5 // pred_region
        // Predicated region
        $region37: #{tpu_custom_call.1} parent=35 // pred_check
          %p237 = pneg %p40
        $region38: #{tpu_custom_call.1} parent=35 // pred_check_branch
          %239 = sbr.rel (%p237) target = $region40
        $region39: #{tpu_custom_call.1} parent=35 // pred_region
          %p240 = scmp.lt.s32.totalorder %s20, 1
          %s241 = scalar_select %p240, %s20, 1
          %s242 = smul.addr %s241, 2
          %s243 = smul.addr %s242, 8
          %s244 = scalar_lea.vmem %s0, %s243
        $region40: #{tpu_custom_call.1} parent=35 // pred_fallthru
          _
      $region36: #{tpu_custom_call.1} parent=5 // pred_fallthru
        _
      %p245 = scmp.le.s32.totalorder 1, %s20
      %p246 = scmp.lt.s32.totalorder %s20, 3
      %p247 = pnand %p245, %p246
      %p248 = pneg %p247
      // Predicated region
      $region41: #{tpu_custom_call.1} parent=5 // pred_check
        _
      $region42: #{tpu_custom_call.1} parent=5 // pred_check_branch
        %250 = sbr.rel (%p247) target = $region44
      $region43: #{tpu_custom_call.1} parent=5 // pred_region
        %s251 = ssub.s32 %s20, 1
        %p252 = scmp.lt.s32.totalorder %s25, 1
        %s253 = scalar_select %p252, %s25, 1
        %s254 = smul.addr %s253, 2
        %s255 = smul.addr %s254, 8
        %s256 = scalar_lea.vmem %s0, %s255
        %p257 = pneg %p46
        %p258 = pneg %p43
        %p259 = pneg %p67
        %p260 = pneg %p64
        %p261 = pneg %p88
        %p262 = pneg %p85
        %p263 = pneg %p109
        %p264 = pneg %p106
        %p265 = pneg %p130
        %p266 = pneg %p127
        %p267 = pneg %p151
        %p268 = pneg %p148
        %p269 = pneg %p177
        %p270 = pneg %p174
        %s271 = sand.u32 %s164, 1
        %s272 = scalar_lea.sflag [#allocation3], %s271
        %s273 = sand.u32 %s164, 1
        %s274 = scalar_lea.vmem [#allocation2], %s273
        %p275 = pneg %p203
        %p276 = pneg %p200
        %s277 = sand.u32 %s190, 1
        %s278 = scalar_lea.sflag [#allocation5], %s277
        %s279 = sand.u32 %s190, 1
        %s280 = scalar_lea.vmem [#allocation4], %s279
        %p281 = scmp.lt.s32.totalorder %s25, 1
        %s282 = scalar_select %p281, %s25, 1
        %s283 = smul.addr %s282, 2
        %s284 = smul.addr %s283, 8
        %s285 = scalar_lea.vmem %s0, %s284
        %v286 = vld [vmem:[%s285] sm:$0xff]
        %v287 = vld [vmem:[%s285 + $0x8] sm:$0xff]
        %v288 = vlaneseq
        %v289 = vand.u32 %v288, 127
        %290 = vset.pattern.permute.xlu0 0
        %291 = vperm.xlu0 %290, %v286
        %v292 = vpop.permute.xlu0 %291
        %293 = vset.pattern.permute.xlu0 0
        %294 = vperm.xlu0 %293, %v287
        %v295 = vpop.permute.xlu0 %294
        %vm296 = vcmp.eq.s32.totalorder %v289, %v292
        %vm297 = vcmp.eq.s32.totalorder %v289, %v295
        %v298 = vsel %vm296, 1, 0
        %v299 = vsel %vm297, 1, 0
        %v300 = vcvt.s32.f32 %v298
        %v301 = vcvt.s32.f32 %v299
        %v302 = vld [vmem:[%s1] sm:$0xff]
        %v303 = vld [vmem:[%s1 + $0x8] sm:$0xff]
        %v304 = vld [vmem:[%s1 + $0x10] sm:$0xff]
        %v305 = vld [vmem:[%s1 + $0x18] sm:$0xff]
        %v306 = vld [vmem:[%s1 + $0x20] sm:$0xff]
        %v307 = vld [vmem:[%s1 + $0x28] sm:$0xff]
        %v308 = vld [vmem:[%s1 + $0x30] sm:$0x3]
        %vm309 = vcmask 408576
        %v311 = vsel %vm309, %v300, 0
        %v314 = vsel %vm309, %v301, 0
        %vm316 = vcmask 1041408
        %v318 = vsel %vm316, %v308, 0
        %320 = vmatprep.subr.mxu0 0.0
        %321 = vmatpush1.msra.mxu0 %v302
        %322 = vmatprep.subr.mxu0 0.0
        %323 = vmatpush1.msra.mxu0 %v303
        %324 = vmatprep.subr.mxu0 0.0
        %325 = vmatpush1.msra.mxu0 %v304
        %326 = vmatprep.subr.mxu0 0.0
        %327 = vmatpush1.msra.mxu0 %v305
        %328 = vmatprep.subr.mxu0 0.0
        %329 = vmatpush1.msra.mxu0 %v306
        %330 = vmatprep.subr.mxu0 0.0
        %331 = vmatpush1.msra.mxu0 %v307
        %332 = vmatprep.subr.mxu0 0.0
        %333 = vmatpush1.msra.mxu0 %v318
        %334 = vmatprep.subr.mxu0 0.0
        %335 = vmatpush1.msra.mxu0 0.0
        %336 = vmatprep.subr.mxu0 0.0
        %337 = vmatpush1.msra.mxu0 0.0
        %338 = vmatprep.subr.mxu0 0.0
        %339 = vmatpush1.msra.mxu0 0.0
        %340 = vmatprep.subr.mxu0 0.0
        %341 = vmatpush1.msra.mxu0 0.0
        %342 = vmatprep.subr.mxu0 0.0
        %343 = vmatpush1.msra.mxu0 0.0
        %344 = vmatprep.subr.mxu0 0.0
        %345 = vmatpush1.msra.mxu0 0.0
        %346 = vmatprep.subr.mxu0 0.0
        %347 = vmatpush1.msra.mxu0 0.0
        %348 = vmatprep.subr.mxu0 0.0
        %349 = vmatpush1.msra.mxu0 0.0
        %350 = vmatprep.subr.mxu0 0.0
        %351 = vmatpush1.msra.mxu0 0.0
        %352 = vmatprep.subr.mxu0 0.0
        %353 = vmatpush1.msra.mxu0 0.0
        %354 = vmatprep.subr.mxu0 0.0
        %355 = vmatpush1.msra.mxu0 0.0
        %356 = vmatprep.subr.mxu0 0.0
        %357 = vmatpush1.msra.mxu0 0.0
        %358 = vmatprep.subr.mxu0 0.0
        %359 = vmatpush1.msra.mxu0 0.0
        %360 = vmatprep.subr.mxu0 0.0
        %361 = vmatpush1.msra.mxu0 0.0
        %362 = vmatprep.subr.mxu0 0.0
        %363 = vmatpush1.msra.mxu0 0.0
        %364 = vmatprep.subr.mxu0 0.0
        %365 = vmatpush1.msra.mxu0 0.0
        %366 = vmatprep.subr.mxu0 0.0
        %367 = vmatpush1.msra.mxu0 0.0
        %368 = vmatprep.subr.mxu0 0.0
        %369 = vmatpush1.msra.mxu0 0.0
        %370 = vmatprep.subr.mxu0 0.0
        %371 = vmatpush1.msra.mxu0 0.0
        %372 = vmatprep.subr.mxu0 0.0
        %373 = vmatpush1.msra.mxu0 0.0
        %374 = vmatprep.subr.mxu0 0.0
        %375 = vmatpush1.msra.mxu0 0.0
        %376 = vmatprep.subr.mxu0 0.0
        %377 = vmatpush1.msra.mxu0 0.0
        %378 = vmatprep.subr.mxu0 0.0
        %379 = vmatpush1.msra.mxu0 0.0
        %380 = vmatprep.subr.mxu0 0.0
        %381 = vmatpush1.msra.mxu0 0.0
        %382 = vmatprep.subr.mxu0 0.0
        %383 = vmatpush1.msra.mxu0 0.0
        %384 = vmatprep.mubr.f32.mxu0 0.0
        %385 = vmatmul.mubr.f32.gmra.mrb[0].mxu0 %v311
        %v386 = vpop.f32.mrb[0].mxu0
        %v387 = vadd.f32 0.0, %v386
        %v388 = vpop.f32.mrb[0].mxu0
        %389 = vmatprep.mubr.f32.mxu0 0.0
        %390 = vmatmul.mubr.f32.gmra.mrb[0].mxu0 %v314
        %v391 = vpop.f32.mrb[0].mxu0
        %v392 = vadd.f32 0.0, %v391
        %v393 = vpop.f32.mrb[0].mxu0
        %394 = vdwg.mxu0
        %v395 = vld [vmem:[%s2] sm:$0xff]
        %v396 = vld [vmem:[%s2 + $0x8] sm:$0xff]
        %v397 = vld [vmem:[%s2 + $0x10] sm:$0xff]
        %v398 = vld [vmem:[%s2 + $0x18] sm:$0xff]
        %v399 = vld [vmem:[%s2 + $0x20] sm:$0xff]
        %v400 = vld [vmem:[%s2 + $0x28] sm:$0xff]
        %v401 = vld [vmem:[%s2 + $0x30] sm:$0xff]
        %v402 = vld [vmem:[%s2 + $0x38] sm:$0xff]
        %vm403 = vcmask 261120
        %v405 = vsel %vm403, %v387, 0
        %v408 = vsel %vm403, %v392, 0
        %410 = vmatprep.subr.mxu0 %v396
        %411 = vmatpush1.msra.mxu0 %v395
        %412 = vmatprep.subr.mxu0 %v398
        %413 = vmatpush1.msra.mxu0 %v397
        %414 = vmatprep.subr.mxu0 %v400
        %415 = vmatpush1.msra.mxu0 %v399
        %416 = vmatprep.subr.mxu0 %v402
        %417 = vmatpush1.msra.mxu0 %v401
        %418 = vmatprep.subr.mxu0 0.0
        %419 = vmatpush1.msra.mxu0 0.0
        %420 = vmatprep.subr.mxu0 0.0
        %421 = vmatpush1.msra.mxu0 0.0
        %422 = vmatprep.subr.mxu0 0.0
        %423 = vmatpush1.msra.mxu0 0.0
        %424 = vmatprep.subr.mxu0 0.0
        %425 = vmatpush1.msra.mxu0 0.0
        %426 = vmatprep.subr.mxu0 0.0
        %427 = vmatpush1.msra.mxu0 0.0
        %428 = vmatprep.subr.mxu0 0.0
        %429 = vmatpush1.msra.mxu0 0.0
        %430 = vmatprep.subr.mxu0 0.0
        %431 = vmatpush1.msra.mxu0 0.0
        %432 = vmatprep.subr.mxu0 0.0
        %433 = vmatpush1.msra.mxu0 0.0
        %434 = vmatprep.subr.mxu0 0.0
        %435 = vmatpush1.msra.mxu0 0.0
        %436 = vmatprep.subr.mxu0 0.0
        %437 = vmatpush1.msra.mxu0 0.0
        %438 = vmatprep.subr.mxu0 0.0
        %439 = vmatpush1.msra.mxu0 0.0
        %440 = vmatprep.subr.mxu0 0.0
        %441 = vmatpush1.msra.mxu0 0.0
        %442 = vmatprep.subr.mxu0 0.0
        %443 = vmatpush1.msra.mxu0 0.0
        %444 = vmatprep.subr.mxu0 0.0
        %445 = vmatpush1.msra.mxu0 0.0
        %446 = vmatprep.subr.mxu0 0.0
        %447 = vmatpush1.msra.mxu0 0.0
        %448 = vmatprep.subr.mxu0 0.0
        %449 = vmatpush1.msra.mxu0 0.0
        %450 = vmatprep.subr.mxu0 0.0
        %451 = vmatpush1.msra.mxu0 0.0
        %452 = vmatprep.subr.mxu0 0.0
        %453 = vmatpush1.msra.mxu0 0.0
        %454 = vmatprep.subr.mxu0 0.0
        %455 = vmatpush1.msra.mxu0 0.0
        %456 = vmatprep.subr.mxu0 0.0
        %457 = vmatpush1.msra.mxu0 0.0
        %458 = vmatprep.subr.mxu0 0.0
        %459 = vmatpush1.msra.mxu0 0.0
        %460 = vmatprep.subr.mxu0 0.0
        %461 = vmatpush1.msra.mxu0 0.0
        %462 = vmatprep.subr.mxu0 0.0
        %463 = vmatpush1.msra.mxu0 0.0
        %464 = vmatprep.subr.mxu0 0.0
        %465 = vmatpush1.msra.mxu0 0.0
        %466 = vmatprep.subr.mxu0 0.0
        %467 = vmatpush1.msra.mxu0 0.0
        %468 = vmatprep.subr.mxu0 0.0
        %469 = vmatpush1.msra.mxu0 0.0
        %470 = vmatprep.subr.mxu0 0.0
        %471 = vmatpush1.msra.mxu0 0.0
        %472 = vmatprep.subr.mxu0 0.0
        %473 = vmatpush1.msra.mxu0 0.0
        %474 = vmatprep.mubr.f32.mxu0 0.0
        %475 = vmatmul.mubr.f32.gmra.mrb[0].mxu0 %v405
        %v476 = vpop.f32.mrb[0].mxu0
        %v477 = vadd.f32 0.0, %v476
        %v478 = vpop.f32.mrb[0].mxu0
        %v479 = vadd.f32 0.0, %v478
        %480 = vmatprep.mubr.f32.mxu0 0.0
        %481 = vmatmul.mubr.f32.gmra.mrb[0].mxu0 %v408
        %v482 = vpop.f32.mrb[0].mxu0
        %v483 = vadd.f32 0.0, %v482
        %v484 = vpop.f32.mrb[0].mxu0
        %v485 = vadd.f32 0.0, %v484
        %486 = vdwg.mxu0
        %v487 = vld [vmem:[%s3] sm:$0x1]
        %v489 = vlaneseq
        %v490 = vshrl.u32 %v489, 7
        %v491 = vsub.s32 0, %v490
        %v492 = vrot.slane %v487, %v491
        %v494 = vadd.f32 %v492, 0.0
        %v495 = vadd.f32 %v494, %v477
        %v496 = vadd.f32 %v494, %v483
        %vm499 = vcmask 1046528
        %v500 = vrot.slane %v477, 1
        %v501 = vrot.slane %v483, 1
        %v502 = vsel %vm499, %v500, %v501
        %503 = vrot.lane.b32.xlu0 %v502, 112
        %v504 = vpop.permute.xlu0 %503
        %505 = vrot.lane.b32.xlu0 %v501, 112
        %v506 = vpop.permute.xlu0 %505
        %v509 = vadd.f32 %v495, %v504
        %v510 = vadd.f32 %v496, %v506
        %vm511 = vcmask 1045504
        %v512 = vrot.slane %v477, 2
        %v513 = vrot.slane %v483, 2
        %v514 = vsel %vm511, %v512, %v513
        %515 = vrot.lane.b32.xlu0 %v514, 96
        %v516 = vpop.permute.xlu0 %515
        %517 = vrot.lane.b32.xlu0 %v513, 96
        %v518 = vpop.permute.xlu0 %517
        %v521 = vadd.f32 %v509, %v516
        %v522 = vadd.f32 %v510, %v518
        %v523 = vmax.f32 %v521, 0.0
        %v524 = vmax.f32 %v522, 0.0
        %vm525 = vcmask 130048
        %v526 = vsel %vm525, %v523, -inf
        %vm527 = vcmask 128000
        %v528 = vsel %vm527, %v524, -inf
        %v529 = vmax.f32 %v526, %v528
        %v530 = vrot.slane %v529, 4
        %v531 = vmax.f32 %v529, %v530
        %v532 = vrot.slane %v531, 2
        %v533 = vmax.f32 %v531, %v532
        %v534 = vrot.slane %v533, 1
        %v535 = vmax.f32 %v533, %v534
        %536 = vrot.lane.b32.xlu0 %v477, 96
        %v537 = vpop.permute.xlu0 %536
        %538 = vrot.lane.b32.xlu0 %v483, 96
        %v539 = vpop.permute.xlu0 %538
        %v542 = vadd.f32 %v494, %v537
        %v543 = vadd.f32 %v494, %v539
        %544 = vrot.lane.b32.xlu0 %v502, 80
        %v545 = vpop.permute.xlu0 %544
        %546 = vrot.lane.b32.xlu0 %v501, 80
        %v547 = vpop.permute.xlu0 %546
        %v550 = vadd.f32 %v542, %v545
        %v551 = vadd.f32 %v543, %v547
        %552 = vrot.lane.b32.xlu0 %v514, 64
        %v553 = vpop.permute.xlu0 %552
        %554 = vrot.lane.b32.xlu0 %v513, 64
        %v555 = vpop.permute.xlu0 %554
        %v558 = vadd.f32 %v550, %v553
        %v559 = vadd.f32 %v551, %v555
        %vm560 = vcmask 1044480
        %v561 = vrot.slane %v477, 3
        %v562 = vrot.slane %v483, 3
        %v563 = vsel %vm560, %v561, %v562
        %564 = vrot.lane.b32.xlu0 %v563, 48
        %v565 = vpop.permute.xlu0 %564
        %566 = vrot.lane.b32.xlu0 %v562, 48
        %v567 = vpop.permute.xlu0 %566
        %v570 = vadd.f32 %v558, %v565
        %v571 = vadd.f32 %v559, %v567
        %v572 = vmax.f32 %v570, 0.0
        %v573 = vmax.f32 %v571, 0.0
        %vm574 = vcmask 261248
        %v575 = vsel %vm574, %v572, -inf
        %vm576 = vcmask 258176
        %v577 = vsel %vm576, %v573, -inf
        %v578 = vmax.f32 %v575, %v577
        %v579 = vrot.slane %v578, 4
        %v580 = vmax.f32 %v578, %v579
        %v581 = vrot.slane %v580, 2
        %v582 = vmax.f32 %v580, %v581
        %v583 = vrot.slane %v582, 1
        %v584 = vmax.f32 %v582, %v583
        %585 = vrot.lane.b32.xlu0 %v477, 48
        %v586 = vpop.permute.xlu0 %585
        %587 = vrot.lane.b32.xlu0 %v483, 48
        %v588 = vpop.permute.xlu0 %587
        %v591 = vadd.f32 %v494, %v586
        %v592 = vadd.f32 %v494, %v588
        %v595 = vrot.slane %v479, 1
        %v596 = vrot.slane %v485, 1
        %v597 = vsel %vm499, %v595, %v596
        %598 = vrot.lane.b32.xlu0 %v597, 32
        %v599 = vpop.permute.xlu0 %598
        %600 = vrot.lane.b32.xlu0 %v596, 32
        %v601 = vpop.permute.xlu0 %600
        %v604 = vadd.f32 %v591, %v599
        %v605 = vadd.f32 %v592, %v601
        %v606 = vrot.slane %v479, 2
        %v607 = vrot.slane %v485, 2
        %v608 = vsel %vm511, %v606, %v607
        %609 = vrot.lane.b32.xlu0 %v608, 16
        %v610 = vpop.permute.xlu0 %609
        %611 = vrot.lane.b32.xlu0 %v607, 16
        %v612 = vpop.permute.xlu0 %611
        %v615 = vadd.f32 %v604, %v610
        %v616 = vadd.f32 %v605, %v612
        %v617 = vrot.slane %v479, 3
        %v618 = vrot.slane %v485, 3
        %v619 = vsel %vm560, %v617, %v618
        %v622 = vadd.f32 %v615, %v619
        %v623 = vadd.f32 %v616, %v618
        %vm624 = vcmask 1043456
        %v625 = vrot.slane %v479, 4
        %v626 = vrot.slane %v485, 4
        %v627 = vsel %vm624, %v625, %v626
        %628 = vrot.lane.b32.xlu0 %v627, 112
        %v629 = vpop.permute.xlu0 %628
        %630 = vrot.lane.b32.xlu0 %v626, 112
        %v631 = vpop.permute.xlu0 %630
        %v634 = vadd.f32 %v622, %v629
        %v635 = vadd.f32 %v623, %v631
        %v636 = vmax.f32 %v634, 0.0
        %v637 = vmax.f32 %v635, 0.0
        %vm638 = vcmask 392448
        %v639 = vsel %vm638, %v636, -inf
        %vm640 = vcmask 388352
        %v641 = vsel %vm640, %v637, -inf
        %v642 = vmax.f32 %v639, %v641
        %v643 = vrot.slane %v642, 4
        %v644 = vmax.f32 %v642, %v643
        %v645 = vrot.slane %v644, 2
        %v646 = vmax.f32 %v644, %v645
        %v647 = vrot.slane %v646, 1
        %v648 = vmax.f32 %v646, %v647
        %v649 = vsel %vm525, %v535, %v584
        %v650 = vsel %vm403, %v649, %v648
        %v651 = vld [vmem:[%s4] sm:$0xff]
        %v652 = vld [vmem:[%s4 + $0x8] sm:$0xff]
        %v653 = vld [vmem:[%s4 + $0x10] sm:$0xff]
        %v654 = vld [vmem:[%s4 + $0x18] sm:$0xff]
        %v655 = vld [vmem:[%s4 + $0x20] sm:$0xff]
        %v656 = vld [vmem:[%s4 + $0x28] sm:$0xff]
        %v657 = vld [vmem:[%s5] sm:$0x1]
        %vm658 = vcmask 392192
        %v660 = vsel %vm658, %v650, 0
        %662 = vmatprep.subr.mxu0 0.0
        %663 = vmatpush1.msra.mxu0 %v651
        %664 = vmatprep.subr.mxu0 0.0
        %665 = vmatpush1.msra.mxu0 %v652
        %666 = vmatprep.subr.mxu0 0.0
        %667 = vmatpush1.msra.mxu0 %v653
        %668 = vmatprep.subr.mxu0 0.0
        %669 = vmatpush1.msra.mxu0 %v654
        %670 = vmatprep.subr.mxu0 0.0
        %671 = vmatpush1.msra.mxu0 %v655
        %672 = vmatprep.subr.mxu0 0.0
        %673 = vmatpush1.msra.mxu0 %v656
        %674 = vmatprep.subr.mxu0 0.0
        %675 = vmatpush1.msra.mxu0 0.0
        %676 = vmatprep.subr.mxu0 0.0
        %677 = vmatpush1.msra.mxu0 0.0
        %678 = vmatprep.subr.mxu0 0.0
        %679 = vmatpush1.msra.mxu0 0.0
        %680 = vmatprep.subr.mxu0 0.0
        %681 = vmatpush1.msra.mxu0 0.0
        %682 = vmatprep.subr.mxu0 0.0
        %683 = vmatpush1.msra.mxu0 0.0
        %684 = vmatprep.subr.mxu0 0.0
        %685 = vmatpush1.msra.mxu0 0.0
        %686 = vmatprep.subr.mxu0 0.0
        %687 = vmatpush1.msra.mxu0 0.0
        %688 = vmatprep.subr.mxu0 0.0
        %689 = vmatpush1.msra.mxu0 0.0
        %690 = vmatprep.subr.mxu0 0.0
        %691 = vmatpush1.msra.mxu0 0.0
        %692 = vmatprep.subr.mxu0 0.0
        %693 = vmatpush1.msra.mxu0 0.0
        %694 = vmatprep.subr.mxu0 0.0
        %695 = vmatpush1.msra.mxu0 0.0
        %696 = vmatprep.subr.mxu0 0.0
        %697 = vmatpush1.msra.mxu0 0.0
        %698 = vmatprep.subr.mxu0 0.0
        %699 = vmatpush1.msra.mxu0 0.0
        %700 = vmatprep.subr.mxu0 0.0
        %701 = vmatpush1.msra.mxu0 0.0
        %702 = vmatprep.subr.mxu0 0.0
        %703 = vmatpush1.msra.mxu0 0.0
        %704 = vmatprep.subr.mxu0 0.0
        %705 = vmatpush1.msra.mxu0 0.0
        %706 = vmatprep.subr.mxu0 0.0
        %707 = vmatpush1.msra.mxu0 0.0
        %708 = vmatprep.subr.mxu0 0.0
        %709 = vmatpush1.msra.mxu0 0.0
        %710 = vmatprep.subr.mxu0 0.0
        %711 = vmatpush1.msra.mxu0 0.0
        %712 = vmatprep.subr.mxu0 0.0
        %713 = vmatpush1.msra.mxu0 0.0
        %714 = vmatprep.subr.mxu0 0.0
        %715 = vmatpush1.msra.mxu0 0.0
        %716 = vmatprep.subr.mxu0 0.0
        %717 = vmatpush1.msra.mxu0 0.0
        %718 = vmatprep.subr.mxu0 0.0
        %719 = vmatpush1.msra.mxu0 0.0
        %720 = vmatprep.subr.mxu0 0.0
        %721 = vmatpush1.msra.mxu0 0.0
        %722 = vmatprep.subr.mxu0 0.0
        %723 = vmatpush1.msra.mxu0 0.0
        %724 = vmatprep.subr.mxu0 0.0
        %725 = vmatpush1.msra.mxu0 0.0
        %726 = vmatprep.mubr.f32.mxu0 0.0
        %727 = vmatmul.mubr.f32.gmra.mrb[0].mxu0 %v660
        %v728 = vpop.f32.mrb[0].mxu0
        %v729 = vadd.f32 %v657, %v728
        %v730 = vpop.f32.mrb[0].mxu0
        %731 = vdwg.mxu0
        %vm732 = vcmask 1040384
        %v733 = vsel %vm732, %v729, -inf
        %734 = vmax.xlane.f32.xlu0 %v733
        %v735 = vpop.xlane.xlu0 %734
        %v736 = vsub.f32 %v729, %v735
        %v737 = vmul.f32 %v736, 1.442695
        %v738 = vpow.pop %v737
        %v739 = vsel %vm732, %v738, 0.0
        %740 = vadd.xlane.f32.xlu0 %v739
        %v741 = vpop.xlane.xlu0 %740
        %v742 = vrcp.pop %v741
        %v743 = vmul.f32 %v738, %v742
        %744 = vst [vmem:[%s274] sm:$0x1] %v743
        %v745 = vsel %vm658, %v650, 0.0
        %746 = vst [vmem:[%s280] sm:$0x1] %v745
        %s747 = sand.u32 %s164, 1
        %s748 = scalar_lea.sflag [#allocation3], %s747
        %s749 = sand.u32 %s164, 1
        %s750 = scalar_lea.vmem [#allocation2], %s749
        %s751 = sand.u32 %s190, 1
        %s752 = scalar_lea.sflag [#allocation5], %s751
        %s753 = sand.u32 %s190, 1
        %s754 = scalar_lea.vmem [#allocation4], %s753
        // Predicated region
        $region45: #{tpu_custom_call.1} parent=43 // pred_check
          %p755 = pneg %p174
        $region46: #{tpu_custom_call.1} parent=43 // pred_check_branch
          %757 = sbr.rel (%p755) target = $region48
        $region47: #{tpu_custom_call.1} parent=43 // pred_region
          %s759 = ssub.s32 16, 16
          %760 = vsyncadd %s748, %s759
          %s761 = smul.addr %s25, 16
          %s762 = scalar_lea.hbm %s6, %s761
          %s764 = sshll.u32 %s750, 4
          %s765 = int_to_ptr.vmem [resolvable:$true] %s764
          %767 = dma.vmem_to_hbm [thread:$0]  %s765, 16, %s762, %s748
        $region48: #{tpu_custom_call.1} parent=43 // pred_fallthru
          _
        // Predicated region
        $region49: #{tpu_custom_call.1} parent=43 // pred_check
          %p768 = pneg %p200
        $region50: #{tpu_custom_call.1} parent=43 // pred_check_branch
          %770 = sbr.rel (%p768) target = $region52
        $region51: #{tpu_custom_call.1} parent=43 // pred_region
          %s772 = ssub.s32 16, 16
          %773 = vsyncadd %s752, %s772
          %s774 = smul.addr %s25, 16
          %s775 = scalar_lea.hbm %s7, %s774
          %s777 = sshll.u32 %s754, 4
          %s778 = int_to_ptr.vmem [resolvable:$true] %s777
          %780 = dma.vmem_to_hbm [thread:$0]  %s778, 16, %s775, %s752
        $region52: #{tpu_custom_call.1} parent=43 // pred_fallthru
          _
      $region44: #{tpu_custom_call.1} parent=5 // pred_fallthru
        _
      %p781 = scmp.le.s32.totalorder 2, %s20
      // Predicated region
      $region53: #{tpu_custom_call.1} parent=5 // pred_check
        %p782 = pneg %p781
      $region54: #{tpu_custom_call.1} parent=5 // pred_check_branch
        %784 = sbr.rel (%p782) target = $region56
      $region55: #{tpu_custom_call.1} parent=5 // pred_region
        %s785 = ssub.s32 %s20, 2
        // Predicated region
        $region57: #{tpu_custom_call.1} parent=55 // pred_check
          %p786 = pneg %p180
        $region58: #{tpu_custom_call.1} parent=55 // pred_check_branch
          %788 = sbr.rel (%p786) target = $region60
        $region59: #{tpu_custom_call.1} parent=55 // pred_region
          %s789 = sand.u32 %s165, 1
          %s790 = scalar_lea.sflag [#allocation3], %s789
          %s791 = sand.u32 %s165, 1
          %s792 = scalar_lea.vmem [#allocation2], %s791
          %793 = dma.done %s790, 16
        $region60: #{tpu_custom_call.1} parent=55 // pred_fallthru
          _
        // Predicated region
        $region61: #{tpu_custom_call.1} parent=55 // pred_check
          %p794 = pneg %p206
        $region62: #{tpu_custom_call.1} parent=55 // pred_check_branch
          %796 = sbr.rel (%p794) target = $region64
        $region63: #{tpu_custom_call.1} parent=55 // pred_region
          %s797 = sand.u32 %s191, 1
          %s798 = scalar_lea.sflag [#allocation5], %s797
          %s799 = sand.u32 %s191, 1
          %s800 = scalar_lea.vmem [#allocation4], %s799
          %801 = dma.done %s798, 16
        $region64: #{tpu_custom_call.1} parent=55 // pred_fallthru
          _
      $region56: #{tpu_custom_call.1} parent=5 // pred_fallthru
        _
    $region6: #{tpu_custom_call.1} parent=1 // loop_footer
      %s24 = sadd.s32 1, %s20
    $region7: #{tpu_custom_call.1} parent=1 // loop_footer_branch
      %19 = sbr.rel target = $region3
    $region8: #{tpu_custom_call.1} parent=1 // loop_exit
      _
    %802 = vsyncpa [#allocation3], 1
    %s803 = scalar_lea.sflag [#allocation3], 1
    %804 = vsyncpa %s803, 1
    %805 = vsyncpa [#allocation5], 1
    %s806 = scalar_lea.sflag [#allocation5], 1
    %807 = vsyncpa %s806, 1

</llo_original>
